<compile_context>
chip_gen: v5e
topology: v5e:2x2
jax: 0.10.0
libtpu: 0.0.40
codegen_flags: <defaults>
</compile_context>

<pallas_src>
import functools

import jax
import jax.numpy as jnp
from jax import lax
from jax.experimental import pallas as pl
from jax.experimental.pallas import tpu as pltpu


def _round_up(x, m):
    return ((x + m - 1) // m) * m


def _attention_kernel(x_ref, wqkv_ref, bqkv_ref, vbig_ref, ihd_ref, irep_ref,
                      wp_ref, bp_ref, xcls_ref, raw_ref, *,
                      num_heads, num_prompts, raw_pad):
    H, Np = num_heads, num_prompts
    TB, C = x_ref.shape

    x = x_ref[...]                                                     # (TB, C) bf16

    # Fused projection (one wide bf16 MXU matmul): columns [q*scale | k | v | s_p].
    # q-scale and the prompt-score matmul are pre-folded into the weight, so the
    # prompt scores come straight out of this dot.  Slice boundaries are
    # multiples of C (128-aligned for real model widths).
    qkv = jnp.dot(x, wqkv_ref[...],
                  preferred_element_type=jnp.float32) + bqkv_ref[...]  # (TB, 3C+Np*H)
    q   = qkv[:, 0:C]             # already scaled by self.scale
    kx  = qkv[:, C:2 * C]         # k of the x row
    vx  = qkv[:, 2 * C:3 * C]     # v of the x row
    s_p = qkv[:, 3 * C:]          # prompt scores (q already scaled)    (TB, Np*H)

    # Score of the x key per head: s_x[b,h] = sum_{c in head h} (q*kx)[b,c].
    # Tiny contraction output (H lanes) -> keep f32 operands (negligible MXU cost).
    s_x = jnp.dot(q * kx, ihd_ref[...],
                  preferred_element_type=jnp.float32)                  # (TB, H)

    # Lane-dense raw-attention slab [s_x | s_p | zero pad]: one unmasked store.
    pieces = [s_x, s_p]
    if raw_pad > 0:
        pieces.append(jnp.zeros((TB, raw_pad), jnp.float32))
    raw_ref[...] = jnp.concatenate(pieces, axis=-1).astype(raw_ref.dtype)

    # Numerically-stable softmax over L = 1 + Np keys per (row, head), in f32.
    m = s_x
    for p in range(Np):                                    # static, small Np
        m = jnp.maximum(m, s_p[:, p * H:(p + 1) * H])
    e_x = jnp.exp(s_x - m)                                             # (TB, H)
    m_rep = jnp.dot(m, irep_ref[...],
                    preferred_element_type=jnp.float32)                # (TB, Np*H)
    e_p = jnp.exp(s_p - m_rep)                                         # (TB, Np*H)
    denom = e_x + lax.dot_general(e_p, irep_ref[...],
                                  (((1,), (1,)), ((), ())),
                                  preferred_element_type=jnp.float32)  # (TB, H)
    inv = pl.reciprocal(denom, approx=True)                            # (TB, H)

    # Weighted values.  Per-head normalization commutes through the
    # block-diagonal Vbig, so apply it once after the value matmul:
    #   o = (e_p @ Vbig + expand(e_x) * vx) * expand(inv)
    o_p = jnp.dot(e_p.astype(jnp.bfloat16), vbig_ref[...],
                  preferred_element_type=jnp.float32)                  # (TB, C)
    ihd = ihd_ref[...]
    e_x_w = lax.dot_general(e_x, ihd, (((1,), (1,)), ((), ())),
                            preferred_element_type=jnp.float32)        # (TB, C)
    inv_w = lax.dot_general(inv, ihd, (((1,), (1,)), ((), ())),
                            preferred_element_type=jnp.float32)        # (TB, C)
    o = (o_p + e_x_w * vx) * inv_w                                     # (TB, C)

    # Output projection (post-softmax `* scale` already folded into wp) + residual.
    y = jnp.dot(o.astype(jnp.bfloat16), wp_ref[...],
                preferred_element_type=jnp.float32) + bp_ref[...]      # (TB, C)
    xcls_ref[...] = (y + x.astype(jnp.float32)).astype(xcls_ref.dtype)


def prepare_attention_constants(prompts, params, *, num_heads):
    """One-time, batch-invariant precompute.  Cache / close over the result
    across calls (e.g. per decode step) instead of rebuilding it every time."""
    wq, bq, wk, bk, wv, bv, wp, bp = params    # weights (in, out), biases (1, out)
    C = wq.shape[0]
    H = num_heads
    D = C // H
    Np = prompts.shape[1]
    scale = D ** (-0.5)

    # Prompt K/V (batch invariant), laid out as block-diagonal per-head matrices
    # so the kernel stays purely 2-D.  Column / row index j = p*H + h.
    p2d = prompts[0].astype(jnp.float32)                               # (Np, C)
    kp = p2d @ wk + bk                                                 # (Np, C)
    vp = p2d @ wv + bv                                                 # (Np, C)
    head_of_c = jnp.arange(C) // D
    head_of_j = jnp.arange(Np * H) % H
    mask_big = head_of_c[:, None] == head_of_j[None, :]                # (C, Np*H)
    kbig = jnp.where(mask_big, jnp.repeat(kp.T, H, axis=1), 0.0)       # (C, Np*H)
    vbig = jnp.where(mask_big.T, jnp.repeat(vp, H, axis=0), 0.0)       # (Np*H, C)

    # Fused projection [q*scale | k | v | s_p]: q-scale and the prompt-score
    # matmul (q @ Kbig) folded into the weight / bias columns.
    wqkv = jnp.concatenate([wq * scale, wk, wv, scale * (wq @ kbig)], axis=1)
    bqkv = jnp.concatenate([bq * scale, bk, bv, scale * (bq @ kbig)], axis=1)

    # 0/1 head indicators: Ihd[c,h] = [head(c)==h], Irep[h,j] = [head(j)==h].
    ihd = (head_of_c[:, None] == jnp.arange(H)[None, :]).astype(jnp.float32)
    irep = (jnp.arange(H)[:, None] == head_of_j[None, :]).astype(jnp.float32)

    # Post-softmax `attn = attn * scale` folded into the projection weight.
    wp_eff = wp * scale

    return (wqkv.astype(jnp.bfloat16),       # bf16 MXU operand
            bqkv.astype(jnp.float32),        # added after the f32-accumulated dot
            vbig.astype(jnp.bfloat16),       # bf16 MXU operand
            ihd, irep,                       # f32 indicator matrices (tiny dots)
            wp_eff.astype(jnp.bfloat16),     # bf16 MXU operand
            bp.astype(jnp.float32))


def _const_spec(shape):
    zeros = (0,) * len(shape)
    idx = lambda b: zeros
    # Constant operands: single-buffered (their block never changes, so default
    # double-buffering only wastes VMEM — matters most on v7x 64 MiB / v5e's
    # 16 MiB default scoped limit).  Fall back gracefully if the installed
    # BlockSpec signature has no pipeline_mode.
    try:
        return pl.BlockSpec(shape, idx, pipeline_mode=pl.Buffered(1))
    except (TypeError, ValueError, AttributeError):
        return pl.BlockSpec(shape, idx)


def my_attention(x, prompts, params, *, num_heads, block_batch=256,
                 prepared=None):
    """x: (B, 1, C); prompts: (1, Np, C).

    Returns (x_cls (B, 1, C) f32, raw_attn (B, H, 1, Np+1) f32).
    `prepared`: output of prepare_attention_constants(); pass it to avoid
    rebuilding the batch-invariant weights on every call."""
    B, N, C = x.shape
    assert N == 1
    _, Np, Cp = prompts.shape
    assert Cp == C
    H = num_heads

    if prepared is None:
        prepared = prepare_attention_constants(prompts, params, num_heads=num_heads)
    wqkv, bqkv, vbig, ihd, irep, wp_eff, bp = prepared

    # Activations go to the MXU in bf16 (f32 accumulation inside the kernel).
    x2d = x.reshape(B, C).astype(jnp.bfloat16)

    # Batch tile: as large as allowed (amortizes per-step overhead, fills the
    # MXU rows); multiple of 8 unless it covers the whole batch.  When B allows,
    # give the "parallel" axis >= 2 steps so v7x's two TensorCores both work.
    TB = B if B <= block_batch else block_batch
    if B > 8 and pl.cdiv(B, TB) < 2:
        TB = max(8, _round_up(pl.cdiv(B, 2), 8))
    grid = (pl.cdiv(B, TB),)
    # NOTE: when B % TB != 0 the padded tail rows are garbage; exp() on them may
    # produce inf/NaN that is discarded by the partial writeback (results stay
    # correct, but it could trip NaN-checking debug tooling).

    W_raw = _round_up((Np + 1) * H, 128)      # lane-dense raw-score slab width
    raw_pad = W_raw - (Np + 1) * H

    kernel = functools.partial(_attention_kernel, num_heads=H,
                               num_prompts=Np, raw_pad=raw_pad)

    x_cls2d, raw = pl.pallas_call(
        kernel,
        out_shape=(
            jax.ShapeDtypeStruct((B, C), jnp.float32),
            jax.ShapeDtypeStruct((B, W_raw), jnp.float32),
        ),
        grid_spec=pltpu.PrefetchScalarGridSpec(
            num_scalar_prefetch=0,
            grid=grid,
            in_specs=[
                pl.BlockSpec((TB, C), lambda b: (b, 0)),   # x tile (bf16)
                _const_spec(wqkv.shape),                   # fused [q|k|v|s_p] weight
                _const_spec(bqkv.shape),                   # fused bias (f32)
                _const_spec(vbig.shape),                   # prompt V (block-diag, bf16)
                _const_spec(ihd.shape),                    # head indicator (f32)
                _const_spec(irep.shape),                   # head replicator (f32)
                _const_spec(wp_eff.shape),                 # proj weight * scale (bf16)
                _const_spec(bp.shape),                     # proj bias (f32)
            ],
            out_specs=[
                pl.BlockSpec((TB, C), lambda b: (b, 0)),
                pl.BlockSpec((TB, W_raw), lambda b: (b, 0)),
            ],
        ),
        compiler_params=pltpu.CompilerParams(
            dimension_semantics=("parallel",),
            vmem_limit_bytes=64 * 1024 * 1024),
    )(x2d, wqkv, bqkv, vbig, ihd, irep, wp_eff, bp)

    x_cls = x_cls2d.reshape(B, 1, C)
    # Reassemble raw_attn (B, H, 1, L) from the dense slab [s_x | s_p | pad];
    # prompt column j = p*H + h; key order is [x, prompt_0 .. prompt_{Np-1}].
    raw_x = raw[:, :H]                                                  # (B, H)
    raw_pm = jnp.transpose(raw[:, H:(Np + 1) * H].reshape(B, Np, H), (0, 2, 1))
    raw_attn = jnp.concatenate([raw_x[:, :, None], raw_pm], axis=-1)[:, :, None, :]
    return x_cls, raw_attn


def my_attention_reference(x, prompts, params, *, num_heads):
    """Pure-JAX f32 reference mirroring the PyTorch forward (default flags)."""
    B, N, C = x.shape
    _, Np, _ = prompts.shape
    head_dim = C // num_heads
    scale = head_dim ** (-0.5)
    wq, bq, wk, bk, wv, bv, wp, bp = params

    res_x = x
    xp = jnp.concatenate([x, jnp.broadcast_to(prompts, (B, Np, C))], axis=1)
    L = Np + N

    q = (x @ wq + bq).reshape(B, N, num_heads, head_dim).transpose(0, 2, 1, 3)
    k = (xp @ wk + bk).reshape(B, L, num_heads, head_dim).transpose(0, 2, 1, 3)
    v = (xp @ wv + bv).reshape(B, L, num_heads, head_dim).transpose(0, 2, 1, 3)

    q = q * scale
    attn = q @ jnp.swapaxes(k, -2, -1)     # (B, H, 1, L)
    raw_attn = attn
    attn = jax.nn.softmax(attn, axis=-1) * scale
    x_cls = (attn @ v).transpose(0, 2, 1, 3).reshape(B, 1, C)
    x_cls = x_cls @ wp + bp
    x_cls = x_cls + res_x
    return x_cls, raw_attn


if __name__ == "__main__":
    B, C = 2, 32
    num_heads = 4
    N_prompts = 7

    key = jax.random.PRNGKey(0)
    keys = jax.random.split(key, 10)
    x = jax.random.normal(keys[0], (B, 1, C), dtype=jnp.float32)
    prompts = jax.random.normal(keys[1], (1, N_prompts, C), dtype=jnp.float32)

    def init_linear(kw, kb, fan_in, fan_out):
        bound = 1.0 / (fan_in ** 0.5)
        w = jax.random.uniform(kw, (fan_in, fan_out), jnp.float32, -bound, bound)
        b = jax.random.uniform(kb, (1, fan_out), jnp.float32, -bound, bound)
        return w, b

    wq, bq = init_linear(keys[2], keys[3], C, C)
    wk, bk = init_linear(keys[4], keys[5], C, C)
    wv, bv = init_linear(keys[6], keys[7], C, C)
    wp, bp = init_linear(keys[8], keys[9], C, C)
    params = (wq, bq, wk, bk, wv, bv, wp, bp)

    # Precompute once (would be cached across decode steps in real use).
    prepared = prepare_attention_constants(prompts, params, num_heads=num_heads)

    x_cls, raw_attn = my_attention(x, prompts, params, num_heads=num_heads,
                                   prepared=prepared)
    jax.block_until_ready((x_cls, raw_attn))

    x_cls_ref, raw_attn_ref = my_attention_reference(x, prompts, params,
                                                     num_heads=num_heads)
    assert x_cls.shape == (B, 1, C)
    assert raw_attn.shape == (B, num_heads, 1, N_prompts + 1)
    # Tolerances account for bf16 MXU operands (scores / values / projection)
    # and the approximate EUP reciprocal in the softmax normalization.
    assert jnp.allclose(raw_attn, raw_attn_ref, atol=2e-2, rtol=2e-2)
    assert jnp.allclose(x_cls, x_cls_ref, atol=3e-2, rtol=3e-2)

    print("KERNEL_OK")
</pallas_src>

<mosaic_0001>
module attributes {stable_mosaic.version = 11 : i64} {
  func.func @_attention_kernel(%arg0: i32, %arg1: memref<2x32xbf16, #tpu.memory_space<vmem>>, %arg2: memref<32x124xbf16, #tpu.memory_space<vmem>>, %arg3: memref<1x124xf32, #tpu.memory_space<vmem>>, %arg4: memref<28x32xbf16, #tpu.memory_space<vmem>>, %arg5: memref<32x4xf32, #tpu.memory_space<vmem>>, %arg6: memref<4x28xf32, #tpu.memory_space<vmem>>, %arg7: memref<32x32xbf16, #tpu.memory_space<vmem>>, %arg8: memref<1x32xf32, #tpu.memory_space<vmem>>, %arg9: memref<2x32xf32, #tpu.memory_space<vmem>>, %arg10: memref<2x128xf32, #tpu.memory_space<vmem>>) attributes {dimension_semantics = [#tpu.dimension_semantics<parallel>], iteration_bounds = array<i64: 1>, scalar_prefetch = 0 : i64, scratch_operands = 0 : i64, tpu.core_type = #tpu.core_type<tc>, window_params = [{transform_indices = @transform_0, window_bounds = array<i64: 2, 32>}, {pipeline_mode = #tpu.pipeline_mode<synchronous>, transform_indices = @transform_1, window_bounds = array<i64: 32, 124>}, {pipeline_mode = #tpu.pipeline_mode<synchronous>, transform_indices = @transform_2, window_bounds = array<i64: 1, 124>}, {pipeline_mode = #tpu.pipeline_mode<synchronous>, transform_indices = @transform_3, window_bounds = array<i64: 28, 32>}, {pipeline_mode = #tpu.pipeline_mode<synchronous>, transform_indices = @transform_4, window_bounds = array<i64: 32, 4>}, {pipeline_mode = #tpu.pipeline_mode<synchronous>, transform_indices = @transform_5, window_bounds = array<i64: 4, 28>}, {pipeline_mode = #tpu.pipeline_mode<synchronous>, transform_indices = @transform_6, window_bounds = array<i64: 32, 32>}, {pipeline_mode = #tpu.pipeline_mode<synchronous>, transform_indices = @transform_7, window_bounds = array<i64: 1, 32>}, {transform_indices = @transform_8, window_bounds = array<i64: 2, 32>}, {transform_indices = @transform_9, window_bounds = array<i64: 2, 128>}]} {
    %c0 = arith.constant 0 : index
    %c0_0 = arith.constant 0 : index
    %0 = vector.load %arg1[%c0, %c0_0] : memref<2x32xbf16, #tpu.memory_space<vmem>>, vector<2x32xbf16>
    %c0_1 = arith.constant 0 : index
    %c0_2 = arith.constant 0 : index
    %1 = vector.load %arg2[%c0_1, %c0_2] : memref<32x124xbf16, #tpu.memory_space<vmem>>, vector<32x124xbf16>
    %cst = arith.constant dense<0.000000e+00> : vector<2x124xf32>
    %2 = tpu.matmul %0, %1, %cst {dimension_numbers = #tpu.dot_dimension_numbers<[1], [0], [0], [1], [0, 0, 1, 1], [], []>} : vector<2x32xbf16>, vector<32x124xbf16>, vector<2x124xf32> -> vector<2x124xf32>
    %c0_3 = arith.constant 0 : index
    %c0_4 = arith.constant 0 : index
    %3 = vector.load %arg3[%c0_3, %c0_4] : memref<1x124xf32, #tpu.memory_space<vmem>>, vector<1x124xf32>
    %4 = vector.broadcast %3 : vector<1x124xf32> to vector<2x124xf32>
    %5 = arith.addf %2, %4 : vector<2x124xf32>
    %6 = vector.extract_strided_slice %5 {offsets = [0, 0], sizes = [2, 32], strides = [1, 1]} : vector<2x124xf32> to vector<2x32xf32>
    %7 = vector.extract_strided_slice %5 {offsets = [0, 32], sizes = [2, 32], strides = [1, 1]} : vector<2x124xf32> to vector<2x32xf32>
    %8 = vector.extract_strided_slice %5 {offsets = [0, 64], sizes = [2, 32], strides = [1, 1]} : vector<2x124xf32> to vector<2x32xf32>
    %9 = vector.extract_strided_slice %5 {offsets = [0, 96], sizes = [2, 28], strides = [1, 1]} : vector<2x124xf32> to vector<2x28xf32>
    %10 = arith.mulf %6, %7 : vector<2x32xf32>
    %c0_5 = arith.constant 0 : index
    %c0_6 = arith.constant 0 : index
    %11 = vector.load %arg5[%c0_5, %c0_6] : memref<32x4xf32, #tpu.memory_space<vmem>>, vector<32x4xf32>
    %cst_7 = arith.constant dense<0.000000e+00> : vector<2x4xf32>
    %12 = tpu.matmul %10, %11, %cst_7 {dimension_numbers = #tpu.dot_dimension_numbers<[1], [0], [0], [1], [0, 0, 1, 1], [], []>} : vector<2x32xf32>, vector<32x4xf32>, vector<2x4xf32> -> vector<2x4xf32>
    %cst_8 = arith.constant 0.000000e+00 : f32
    %13 = vector.broadcast %cst_8 : f32 to vector<2x96xf32>
    %14 = tpu.concatenate %12, %9, %13 in 1 : vector<2x4xf32>, vector<2x28xf32>, vector<2x96xf32> -> vector<2x128xf32>
    %c0_9 = arith.constant 0 : index
    %c0_10 = arith.constant 0 : index
    %15 = vector.load %arg10[%c0_9, %c0_10] : memref<2x128xf32, #tpu.memory_space<vmem>>, vector<2x128xf32>
    tpu.vector_store %arg10[%c0_9, %c0_10], %14 {strides = array<i32>} : memref<2x128xf32, #tpu.memory_space<vmem>>, vector<2x128xf32>,
    %16 = vector.extract_strided_slice %9 {offsets = [0, 0], sizes = [2, 4], strides = [1, 1]} : vector<2x28xf32> to vector<2x4xf32>
    %17 = arith.maximumf %12, %16 : vector<2x4xf32>
    %18 = vector.extract_strided_slice %9 {offsets = [0, 4], sizes = [2, 4], strides = [1, 1]} : vector<2x28xf32> to vector<2x4xf32>
    %19 = arith.maximumf %17, %18 : vector<2x4xf32>
    %20 = vector.extract_strided_slice %9 {offsets = [0, 8], sizes = [2, 4], strides = [1, 1]} : vector<2x28xf32> to vector<2x4xf32>
    %21 = arith.maximumf %19, %20 : vector<2x4xf32>
    %22 = vector.extract_strided_slice %9 {offsets = [0, 12], sizes = [2, 4], strides = [1, 1]} : vector<2x28xf32> to vector<2x4xf32>
    %23 = arith.maximumf %21, %22 : vector<2x4xf32>
    %24 = vector.extract_strided_slice %9 {offsets = [0, 16], sizes = [2, 4], strides = [1, 1]} : vector<2x28xf32> to vector<2x4xf32>
    %25 = arith.maximumf %23, %24 : vector<2x4xf32>
    %26 = vector.extract_strided_slice %9 {offsets = [0, 20], sizes = [2, 4], strides = [1, 1]} : vector<2x28xf32> to vector<2x4xf32>
    %27 = arith.maximumf %25, %26 : vector<2x4xf32>
    %28 = vector.extract_strided_slice %9 {offsets = [0, 24], sizes = [2, 4], strides = [1, 1]} : vector<2x28xf32> to vector<2x4xf32>
    %29 = arith.maximumf %27, %28 : vector<2x4xf32>
    %30 = arith.subf %12, %29 : vector<2x4xf32>
    %31 = math.exp %30 : vector<2x4xf32>
    %c0_11 = arith.constant 0 : index
    %c0_12 = arith.constant 0 : index
    %32 = vector.load %arg6[%c0_11, %c0_12] : memref<4x28xf32, #tpu.memory_space<vmem>>, vector<4x28xf32>
    %cst_13 = arith.constant dense<0.000000e+00> : vector<2x28xf32>
    %33 = tpu.matmul %29, %32, %cst_13 {dimension_numbers = #tpu.dot_dimension_numbers<[1], [0], [0], [1], [0, 0, 1, 1], [], []>} : vector<2x4xf32>, vector<4x28xf32>, vector<2x28xf32> -> vector<2x28xf32>
    %34 = arith.subf %9, %33 : vector<2x28xf32>
    %35 = math.exp %34 : vector<2x28xf32>
    %c0_14 = arith.constant 0 : index
    %c0_15 = arith.constant 0 : index
    %36 = vector.load %arg6[%c0_14, %c0_15] : memref<4x28xf32, #tpu.memory_space<vmem>>, vector<4x28xf32>
    %cst_16 = arith.constant dense<0.000000e+00> : vector<2x4xf32>
    %37 = tpu.matmul %35, %36, %cst_16 {dimension_numbers = #tpu.dot_dimension_numbers<[1], [1], [0], [0], [0, 0, 1, 0], [], []>} : vector<2x28xf32>, vector<4x28xf32>, vector<2x4xf32> -> vector<2x4xf32>
    %38 = arith.addf %31, %37 : vector<2x4xf32>
    %39 = tpu.reciprocal %38 {approx = true} : vector<2x4xf32> -> vector<2x4xf32>
    %40 = arith.truncf %35 : vector<2x28xf32> to vector<2x28xbf16>
    %c0_17 = arith.constant 0 : index
    %c0_18 = arith.constant 0 : index
    %41 = vector.load %arg4[%c0_17, %c0_18] : memref<28x32xbf16, #tpu.memory_space<vmem>>, vector<28x32xbf16>
    %cst_19 = arith.constant dense<0.000000e+00> : vector<2x32xf32>
    %42 = tpu.matmul %40, %41, %cst_19 {dimension_numbers = #tpu.dot_dimension_numbers<[1], [0], [0], [1], [0, 0, 1, 1], [], []>} : vector<2x28xbf16>, vector<28x32xbf16>, vector<2x32xf32> -> vector<2x32xf32>
    %c0_20 = arith.constant 0 : index
    %c0_21 = arith.constant 0 : index
    %43 = vector.load %arg5[%c0_20, %c0_21] : memref<32x4xf32, #tpu.memory_space<vmem>>, vector<32x4xf32>
    %cst_22 = arith.constant dense<0.000000e+00> : vector<2x32xf32>
    %44 = tpu.matmul %31, %43, %cst_22 {dimension_numbers = #tpu.dot_dimension_numbers<[1], [1], [0], [0], [0, 0, 1, 0], [], []>} : vector<2x4xf32>, vector<32x4xf32>, vector<2x32xf32> -> vector<2x32xf32>
    %cst_23 = arith.constant dense<0.000000e+00> : vector<2x32xf32>
    %45 = tpu.matmul %39, %43, %cst_23 {dimension_numbers = #tpu.dot_dimension_numbers<[1], [1], [0], [0], [0, 0, 1, 0], [], []>} : vector<2x4xf32>, vector<32x4xf32>, vector<2x32xf32> -> vector<2x32xf32>
    %46 = arith.mulf %44, %8 : vector<2x32xf32>
    %47 = arith.addf %42, %46 : vector<2x32xf32>
    %48 = arith.mulf %47, %45 : vector<2x32xf32>
    %49 = arith.truncf %48 : vector<2x32xf32> to vector<2x32xbf16>
    %c0_24 = arith.constant 0 : index
    %c0_25 = arith.constant 0 : index
    %50 = vector.load %arg7[%c0_24, %c0_25] : memref<32x32xbf16, #tpu.memory_space<vmem>>, vector<32x32xbf16>
    %cst_26 = arith.constant dense<0.000000e+00> : vector<2x32xf32>
    %51 = tpu.matmul %49, %50, %cst_26 {dimension_numbers = #tpu.dot_dimension_numbers<[1], [0], [0], [1], [0, 0, 1, 1], [], []>} : vector<2x32xbf16>, vector<32x32xbf16>, vector<2x32xf32> -> vector<2x32xf32>
    %c0_27 = arith.constant 0 : index
    %c0_28 = arith.constant 0 : index
    %52 = vector.load %arg8[%c0_27, %c0_28] : memref<1x32xf32, #tpu.memory_space<vmem>>, vector<1x32xf32>
    %53 = vector.broadcast %52 : vector<1x32xf32> to vector<2x32xf32>
    %54 = arith.addf %51, %53 : vector<2x32xf32>
    %55 = arith.extf %0 : vector<2x32xbf16> to vector<2x32xf32>
    %56 = arith.addf %54, %55 : vector<2x32xf32>
    %c0_29 = arith.constant 0 : index
    %c0_30 = arith.constant 0 : index
    %57 = vector.load %arg9[%c0_29, %c0_30] : memref<2x32xf32, #tpu.memory_space<vmem>>, vector<2x32xf32>
    tpu.vector_store %arg9[%c0_29, %c0_30], %56 {strides = array<i32>} : memref<2x32xf32, #tpu.memory_space<vmem>>, vector<2x32xf32>,
    return
  }
  func.func @transform_0(%arg0: i32) -> (i32, i32) {
    %c0_i32 = arith.constant 0 : i32
    %c0_i32_0 = arith.constant 0 : i32
    return %arg0, %c0_i32 : i32, i32
  }
  func.func @transform_1(%arg0: i32) -> (i32, i32) {
    %c0_i32 = arith.constant 0 : i32
    %c0_i32_0 = arith.constant 0 : i32
    %c0_i32_1 = arith.constant 0 : i32
    return %c0_i32, %c0_i32_0 : i32, i32
  }
  func.func @transform_2(%arg0: i32) -> (i32, i32) {
    %c0_i32 = arith.constant 0 : i32
    %c0_i32_0 = arith.constant 0 : i32
    %c0_i32_1 = arith.constant 0 : i32
    return %c0_i32, %c0_i32_0 : i32, i32
  }
  func.func @transform_3(%arg0: i32) -> (i32, i32) {
    %c0_i32 = arith.constant 0 : i32
    %c0_i32_0 = arith.constant 0 : i32
    %c0_i32_1 = arith.constant 0 : i32
    return %c0_i32, %c0_i32_0 : i32, i32
  }
  func.func @transform_4(%arg0: i32) -> (i32, i32) {
    %c0_i32 = arith.constant 0 : i32
    %c0_i32_0 = arith.constant 0 : i32
    %c0_i32_1 = arith.constant 0 : i32
    return %c0_i32, %c0_i32_0 : i32, i32
  }
  func.func @transform_5(%arg0: i32) -> (i32, i32) {
    %c0_i32 = arith.constant 0 : i32
    %c0_i32_0 = arith.constant 0 : i32
    %c0_i32_1 = arith.constant 0 : i32
    return %c0_i32, %c0_i32_0 : i32, i32
  }
  func.func @transform_6(%arg0: i32) -> (i32, i32) {
    %c0_i32 = arith.constant 0 : i32
    %c0_i32_0 = arith.constant 0 : i32
    %c0_i32_1 = arith.constant 0 : i32
    return %c0_i32, %c0_i32_0 : i32, i32
  }
  func.func @transform_7(%arg0: i32) -> (i32, i32) {
    %c0_i32 = arith.constant 0 : i32
    %c0_i32_0 = arith.constant 0 : i32
    %c0_i32_1 = arith.constant 0 : i32
    return %c0_i32, %c0_i32_0 : i32, i32
  }
  func.func @transform_8(%arg0: i32) -> (i32, i32) {
    %c0_i32 = arith.constant 0 : i32
    %c0_i32_0 = arith.constant 0 : i32
    return %arg0, %c0_i32 : i32, i32
  }
  func.func @transform_9(%arg0: i32) -> (i32, i32) {
    %c0_i32 = arith.constant 0 : i32
    %c0_i32_0 = arith.constant 0 : i32
    return %arg0, %c0_i32 : i32, i32
  }
}

</mosaic_0001>

<llo_original>
// kernel: tpu_custom_call.1
$region0: #{tpu_custom_call.1}
  #allocation0 [shape = 'u32[]', space=smem, size = 0x4, offset = 0x4, fixed_abs, tag = 'smem constant byte address 0x4 - core index']
  #allocation1 [shape = 'u32[72,128]{1,0:T(1,128)}', space=vmem, size = 0x9000, scoped, tag = 'internal scratch']
  %s0 = inlined_call_operand.hbm [shape: bf16[2,32], index: 0, kind: input, shape index: {}]
  %s1 = inlined_call_operand.vmem [shape: bf16[32,124], index: 1, kind: input, shape index: {}]
  %s2 = inlined_call_operand.vmem [shape: f32[1,124], index: 2, kind: input, shape index: {}]
  %s3 = inlined_call_operand.vmem [shape: bf16[28,32], index: 3, kind: input, shape index: {}]
  %s4 = inlined_call_operand.vmem [shape: f32[32,4], index: 4, kind: input, shape index: {}]
  %s5 = inlined_call_operand.vmem [shape: f32[4,28], index: 5, kind: input, shape index: {}]
  %s6 = inlined_call_operand.hbm [shape: bf16[32,32], index: 6, kind: input, shape index: {}]
  %s7 = inlined_call_operand.vmem [shape: f32[1,32], index: 7, kind: input, shape index: {}]
  %s8 = inlined_call_operand.hbm [shape: f32[2,32], index: 8, kind: output, shape index: {0}]
  %s9 = inlined_call_operand.hbm [shape: f32[2,128], index: 9, kind: output, shape index: {1}]
  %10 = xla_tuple %s8, %s9
  %s11 = sld [smem:[#allocation0]]
  $region58: #{tpu_custom_call.1} parent=0
    _
  %s13 = ssub.s32 1, %s11
  %s14 = scalar_select 0, %s13, %s11
  $region1: #{tpu_custom_call.1} parent=0
    #allocation2 [shape = 'u8[512]{0}', space=vmem, size = 0x400, scoped, tag = 'input window, operand 0, single buffered']
    #allocation3 [shape = 's32[1]{0}', space=sflag, size = 0x4, scoped, tag = 'scoped memory for tpu_custom_call.1']
    #allocation4 [shape = 's32[1]{0}', space=sflag, size = 0x4, scoped, tag = 'scoped memory for tpu_custom_call.1']
    #allocation5 [shape = 'u8[8192]{0}', space=vmem, size = 0x2000, scoped, tag = 'input window, operand 6, single buffered']
    #allocation6 [shape = 's32[1]{0}', space=sflag, size = 0x4, scoped, tag = 'scoped memory for tpu_custom_call.1']
    #allocation7 [shape = 'u8[1024]{0}', space=vmem, size = 0x400, scoped, tag = 'output window, operand 0, single buffered']
    #allocation8 [shape = 'u8[1024]{0}', space=vmem, size = 0x400, scoped, tag = 'output window, operand 1, single buffered']
    #allocation9 [shape = 's32[1]{0}', space=sflag, size = 0x4, scoped, tag = 'scoped memory for tpu_custom_call.1']
    %15 = vsyncpa [#allocation3], 0
    %16 = vsyncpa [#allocation6], 0
    %17 = vsyncpa [#allocation4], 0
    %18 = vsyncpa [#allocation9], 0
    // Predicated region
    $region2: #{tpu_custom_call.1} parent=1 // pred_check
      _
    $region3: #{tpu_custom_call.1} parent=1 // pred_check_branch
      %20 = sbr.rel (0) target = $region5
    $region4: #{tpu_custom_call.1} parent=1 // pred_region
      %22 = vsyncadd [#allocation3], 0
      %s24 = sshll.u32 %s0, 4
      %s25 = int_to_ptr.hbm [resolvable:$true] %s24
      %s26 = sshll.u32 [#allocation2], 4
      %s27 = int_to_ptr.vmem [resolvable:$true] %s26
      %29 = dma.hbm_to_vmem [thread:$0]  %s25, 16, %s27, [#allocation3]
    $region5: #{tpu_custom_call.1} parent=1 // pred_fallthru
      _
    // Predicated region
    $region6: #{tpu_custom_call.1} parent=1 // pred_check
      _
    $region7: #{tpu_custom_call.1} parent=1 // pred_check_branch
      %31 = sbr.rel (0) target = $region9
    $region8: #{tpu_custom_call.1} parent=1 // pred_region
      _
    $region9: #{tpu_custom_call.1} parent=1 // pred_fallthru
      _
    // Predicated region
    $region10: #{tpu_custom_call.1} parent=1 // pred_check
      _
    $region11: #{tpu_custom_call.1} parent=1 // pred_check_branch
      %33 = sbr.rel (0) target = $region13
    $region12: #{tpu_custom_call.1} parent=1 // pred_region
      _
    $region13: #{tpu_custom_call.1} parent=1 // pred_fallthru
      _
    // Predicated region
    $region14: #{tpu_custom_call.1} parent=1 // pred_check
      _
    $region15: #{tpu_custom_call.1} parent=1 // pred_check_branch
      %35 = sbr.rel (0) target = $region17
    $region16: #{tpu_custom_call.1} parent=1 // pred_region
      _
    $region17: #{tpu_custom_call.1} parent=1 // pred_fallthru
      _
    // Predicated region
    $region18: #{tpu_custom_call.1} parent=1 // pred_check
      _
    $region19: #{tpu_custom_call.1} parent=1 // pred_check_branch
      %37 = sbr.rel (0) target = $region21
    $region20: #{tpu_custom_call.1} parent=1 // pred_region
      _
    $region21: #{tpu_custom_call.1} parent=1 // pred_fallthru
      _
    // Predicated region
    $region22: #{tpu_custom_call.1} parent=1 // pred_check
      _
    $region23: #{tpu_custom_call.1} parent=1 // pred_check_branch
      %39 = sbr.rel (0) target = $region25
    $region24: #{tpu_custom_call.1} parent=1 // pred_region
      _
    $region25: #{tpu_custom_call.1} parent=1 // pred_fallthru
      _
    // Predicated region
    $region26: #{tpu_custom_call.1} parent=1 // pred_check
      _
    $region27: #{tpu_custom_call.1} parent=1 // pred_check_branch
      %41 = sbr.rel (0) target = $region29
    $region28: #{tpu_custom_call.1} parent=1 // pred_region
      %43 = vsyncadd [#allocation6], 0
      %s44 = sshll.u32 %s6, 4
      %s45 = int_to_ptr.hbm [resolvable:$true] %s44
      %s46 = sshll.u32 [#allocation5], 4
      %s47 = int_to_ptr.vmem [resolvable:$true] %s46
      %52 = dma.hbm_to_vmem [thread:$0]  %s45, 256, %s47, [#allocation6], 64, 64, 4
    $region29: #{tpu_custom_call.1} parent=1 // pred_fallthru
      _
    // Predicated region
    $region30: #{tpu_custom_call.1} parent=1 // pred_check
      _
    $region31: #{tpu_custom_call.1} parent=1 // pred_check_branch
      %54 = sbr.rel (0) target = $region33
    $region32: #{tpu_custom_call.1} parent=1 // pred_region
      _
    $region33: #{tpu_custom_call.1} parent=1 // pred_fallthru
      _
    // Predicated region
    $region34: #{tpu_custom_call.1} parent=1 // pred_check
      _
    $region35: #{tpu_custom_call.1} parent=1 // pred_check_branch
      %56 = sbr.rel (0) target = $region37
    $region36: #{tpu_custom_call.1} parent=1 // pred_region
      %58 = dma.done [#allocation3], 16
    $region37: #{tpu_custom_call.1} parent=1 // pred_fallthru
      _
    // Predicated region
    $region38: #{tpu_custom_call.1} parent=1 // pred_check
      _
    $region39: #{tpu_custom_call.1} parent=1 // pred_check_branch
      %60 = sbr.rel (0) target = $region41
    $region40: #{tpu_custom_call.1} parent=1 // pred_region
      %62 = dma.done [#allocation6], 256
    $region41: #{tpu_custom_call.1} parent=1 // pred_fallthru
      _
    %v64 = vld [vmem:[#allocation2] sm:$0x1]
    %v65 = vld [vmem:[%s1] sm:$0xf]
    %v66 = vld [vmem:[%s1 + $0x4] sm:$0xf]
    %v67 = vld [vmem:[%s1 + $0x8] sm:$0xf]
    %v68 = vld [vmem:[%s1 + $0xc] sm:$0xf]
    %v69 = vld [vmem:[%s2] sm:$0x1]
    %v71 = vperm.slane %v69, 0
    %v77 = vunpack.c.l.b16 %v65
    %v78 = vunpack.c.l.b16 %v66
    %v79 = vunpack.c.l.b16 %v67
    %v80 = vunpack.c.l.b16 %v68
    %v81 = vpack.c.b16 %v78, %v77
    %v82 = vpack.c.b16 %v80, %v79
    %vm85 = vcmask 261120
    %v87 = vsel %vm85, %v64, 0
    %89 = vmatpush.bf16.msra.mxu0 0
    %90 = vmatpush.bf16.msra.mxu0 0
    %91 = vmatpush.bf16.msra.mxu0 0
    %92 = vmatpush.bf16.msra.mxu0 0
    %93 = vmatpush.bf16.msra.mxu0 0
    %94 = vmatpush.bf16.msra.mxu0 0
    %95 = vmatpush.bf16.msra.mxu0 %v82
    %96 = vmatpush.bf16.msra.mxu0 %v81
    %97 = vmatmul.bf16.gmra.mxu0 %v87
    %v98 = vpop.f32.mrf.mxu0
    %v99 = vadd.f32 %v71, %v98
    %v100 = vpop.f32.mrf.mxu0
    %101 = vdwg.mxu0
    %103 = vrot.lane.b32.xlu0 %v99, 96
    %v104 = vpop.permute.xlu0 %103
    %v106 = vmul.f32 %v99, %v104
    %v107 = vld [vmem:[%s4] sm:$0xff]
    %v108 = vld [vmem:[%s4 + $0x8] sm:$0xff]
    %v109 = vld [vmem:[%s4 + $0x10] sm:$0xff]
    %v110 = vld [vmem:[%s4 + $0x18] sm:$0xff]
    %v112 = vsel %vm85, %v106, 0
    %114 = vmatpush.msra.mxu0 0.0
    %115 = vmatpush.msra.mxu0 0.0
    %116 = vmatpush.msra.mxu0 0.0
    %117 = vmatpush.msra.mxu0 0.0
    %118 = vmatpush.msra.mxu0 0.0
    %119 = vmatpush.msra.mxu0 0.0
    %120 = vmatpush.msra.mxu0 0.0
    %121 = vmatpush.msra.mxu0 0.0
    %122 = vmatpush.msra.mxu0 0.0
    %123 = vmatpush.msra.mxu0 0.0
    %124 = vmatpush.msra.mxu0 0.0
    %125 = vmatpush.msra.mxu0 0.0
    %126 = vmatpush.msra.mxu0 %v110
    %127 = vmatpush.msra.mxu0 %v109
    %128 = vmatpush.msra.mxu0 %v108
    %129 = vmatpush.msra.mxu0 %v107
    %130 = vmatmul.f32.gmra.mxu0 %v112
    %v131 = vpop.f32.mrf.mxu0
    %v132 = vadd.f32 0.0, %v131
    %133 = vdwg.mxu0
    %134 = vrot.lane.b32.xlu0 %v99, 36
    %v135 = vpop.permute.xlu0 %134
    %vm137 = vcmask 31744
    %v138 = vsel %vm137, %v132, %v135
    %v139 = vsel %vm85, %v138, 0.0
    %140 = vst [vmem:[#allocation8] sm:$0x3] %v139
    %141 = vrot.lane.b32.xlu0 %v99, 32
    %v142 = vpop.permute.xlu0 %141
    %v144 = vmax.f32 %v132, %v142
    %145 = vrot.lane.b32.xlu0 %v99, 28
    %v146 = vpop.permute.xlu0 %145
    %v148 = vmax.f32 %v144, %v146
    %149 = vrot.lane.b32.xlu0 %v99, 24
    %v150 = vpop.permute.xlu0 %149
    %v152 = vmax.f32 %v148, %v150
    %153 = vrot.lane.b32.xlu0 %v99, 20
    %v154 = vpop.permute.xlu0 %153
    %v156 = vmax.f32 %v152, %v154
    %157 = vrot.lane.b32.xlu0 %v99, 16
    %v158 = vpop.permute.xlu0 %157
    %v160 = vmax.f32 %v156, %v158
    %161 = vrot.lane.b32.xlu0 %v99, 12
    %v162 = vpop.permute.xlu0 %161
    %v164 = vmax.f32 %v160, %v162
    %165 = vrot.lane.b32.xlu0 %v99, 8
    %v166 = vpop.permute.xlu0 %165
    %v168 = vmax.f32 %v164, %v166
    %v169 = vsub.f32 %v132, %v168
    %v170 = vmul.f32 %v169, 1.442695
    %v171 = vpow.pop %v170
    %v172 = vld [vmem:[%s5] sm:$0xf]
    %v174 = vsel %vm137, %v168, 0
    %vm176 = vcmask 1043456
    %v178 = vsel %vm176, %v172, 0
    %180 = vmatpush.msra.mxu0 0.0
    %181 = vmatpush.msra.mxu0 0.0
    %182 = vmatpush.msra.mxu0 0.0
    %183 = vmatpush.msra.mxu0 0.0
    %184 = vmatpush.msra.mxu0 0.0
    %185 = vmatpush.msra.mxu0 0.0
    %186 = vmatpush.msra.mxu0 0.0
    %187 = vmatpush.msra.mxu0 0.0
    %188 = vmatpush.msra.mxu0 0.0
    %189 = vmatpush.msra.mxu0 0.0
    %190 = vmatpush.msra.mxu0 0.0
    %191 = vmatpush.msra.mxu0 0.0
    %192 = vmatpush.msra.mxu0 0.0
    %193 = vmatpush.msra.mxu0 0.0
    %194 = vmatpush.msra.mxu0 0.0
    %195 = vmatpush.msra.mxu0 %v178
    %196 = vmatmul.f32.gmra.mxu0 %v174
    %v197 = vpop.f32.mrf.mxu0
    %v198 = vadd.f32 0.0, %v197
    %199 = vdwg.mxu0
    %201 = vrot.lane.b32.xlu0 %v198, 96
    %v202 = vpop.permute.xlu0 %201
    %v204 = vsub.f32 %v99, %v202
    %v205 = vmul.f32 %v204, 1.442695
    %v206 = vpow.pop %v205
    %208 = vrot.lane.b32.xlu0 %v206, 32
    %v209 = vpop.permute.xlu0 %208
    %vm210 = vcmask 228352
    %v211 = vsel %vm210, %v209, 0
    %v213 = vsel %vm210, %v172, 0
    %215 = vmatpush.xpose.msra.mxu0 0.0
    %216 = vmatpush.xpose.msra.mxu0 0.0
    %217 = vmatpush.xpose.msra.mxu0 0.0
    %218 = vmatpush.xpose.msra.mxu0 0.0
    %219 = vmatpush.xpose.msra.mxu0 0.0
    %220 = vmatpush.xpose.msra.mxu0 0.0
    %221 = vmatpush.xpose.msra.mxu0 0.0
    %222 = vmatpush.xpose.msra.mxu0 0.0
    %223 = vmatpush.xpose.msra.mxu0 0.0
    %224 = vmatpush.xpose.msra.mxu0 0.0
    %225 = vmatpush.xpose.msra.mxu0 0.0
    %226 = vmatpush.xpose.msra.mxu0 0.0
    %227 = vmatpush.xpose.msra.mxu0 0.0
    %228 = vmatpush.xpose.msra.mxu0 0.0
    %229 = vmatpush.xpose.msra.mxu0 0.0
    %230 = vmatpush.xpose.msra.mxu0 %v213
    %231 = vmatmul.f32.gmra.mxu0 %v211
    %v232 = vpop.f32.mrf.mxu0
    %v233 = vadd.f32 0.0, %v232
    %234 = vdwg.mxu0
    %v235 = vadd.f32 %v171, %v233
    %v236 = vrcp.pop %v235
    %v237 = vpack.c.bf16 %v206, %v206
    %v238 = vld [vmem:[%s3] sm:$0xf]
    %v239 = vld [vmem:[%s3 + $0x4] sm:$0xf]
    %v240 = vld [vmem:[%s3 + $0x8] sm:$0xf]
    %v241 = vld [vmem:[%s3 + $0xc] sm:$0x3]
    %v242 = vld [vmem:[%s4] sm:$0xff]
    %v243 = vld [vmem:[%s4 + $0x8] sm:$0xff]
    %v244 = vld [vmem:[%s4 + $0x10] sm:$0xff]
    %v245 = vld [vmem:[%s4 + $0x18] sm:$0xff]
    %v247 = vsel %vm137, %v171, 0
    %v250 = vsel %vm137, %v242, 0
    %v253 = vsel %vm137, %v243, 0
    %v256 = vsel %vm137, %v244, 0
    %v259 = vsel %vm137, %v245, 0
    %261 = vmatpush.xpose.msra.mxu0 0.0
    %262 = vmatpush.xpose.msra.mxu0 0.0
    %263 = vmatpush.xpose.msra.mxu0 0.0
    %264 = vmatpush.xpose.msra.mxu0 0.0
    %265 = vmatpush.xpose.msra.mxu0 0.0
    %266 = vmatpush.xpose.msra.mxu0 0.0
    %267 = vmatpush.xpose.msra.mxu0 0.0
    %268 = vmatpush.xpose.msra.mxu0 0.0
    %269 = vmatpush.xpose.msra.mxu0 0.0
    %270 = vmatpush.xpose.msra.mxu0 0.0
    %271 = vmatpush.xpose.msra.mxu0 0.0
    %272 = vmatpush.xpose.msra.mxu0 0.0
    %273 = vmatpush.xpose.msra.mxu0 %v259
    %274 = vmatpush.xpose.msra.mxu0 %v256
    %275 = vmatpush.xpose.msra.mxu0 %v253
    %276 = vmatpush.xpose.msra.mxu0 %v250
    %277 = vmatmul.f32.gmra.mxu0 %v247
    %v278 = vpop.f32.mrf.mxu0
    %v279 = vadd.f32 0.0, %v278
    %280 = vdwg.mxu0
    %v282 = vsel %vm137, %v236, 0
    %284 = vmatpush.xpose.msra.mxu0 0.0
    %285 = vmatpush.xpose.msra.mxu0 0.0
    %286 = vmatpush.xpose.msra.mxu0 0.0
    %287 = vmatpush.xpose.msra.mxu0 0.0
    %288 = vmatpush.xpose.msra.mxu0 0.0
    %289 = vmatpush.xpose.msra.mxu0 0.0
    %290 = vmatpush.xpose.msra.mxu0 0.0
    %291 = vmatpush.xpose.msra.mxu0 0.0
    %292 = vmatpush.xpose.msra.mxu0 0.0
    %293 = vmatpush.xpose.msra.mxu0 0.0
    %294 = vmatpush.xpose.msra.mxu0 0.0
    %295 = vmatpush.xpose.msra.mxu0 0.0
    %296 = vmatpush.xpose.msra.mxu0 %v259
    %297 = vmatpush.xpose.msra.mxu0 %v256
    %298 = vmatpush.xpose.msra.mxu0 %v253
    %299 = vmatpush.xpose.msra.mxu0 %v250
    %300 = vmatmul.f32.gmra.mxu0 %v282
    %v301 = vpop.f32.mrf.mxu0
    %v302 = vadd.f32 0.0, %v301
    %303 = vdwg.mxu0
    %304 = vrot.lane.b32.xlu0 %v99, 64
    %v305 = vpop.permute.xlu0 %304
    %v307 = vmul.f32 %v279, %v305
    %309 = vrot.lane.b32.xlu0 %v237, 32
    %v310 = vpop.permute.xlu0 %309
    %v315 = vunpack.c.l.b16 %v238
    %v316 = vunpack.c.l.b16 %v239
    %v317 = vunpack.c.l.b16 %v240
    %v318 = vunpack.c.l.b16 %v241
    %v319 = vpack.c.b16 %v316, %v315
    %v320 = vpack.c.b16 %v318, %v317
    %v323 = vsel %vm210, %v310, 0
    %vm325 = vcmask 1045504
    %v327 = vsel %vm325, %v320, 0
    %329 = vmatpush.bf16.msra.mxu0 0
    %330 = vmatpush.bf16.msra.mxu0 0
    %331 = vmatpush.bf16.msra.mxu0 0
    %332 = vmatpush.bf16.msra.mxu0 0
    %333 = vmatpush.bf16.msra.mxu0 0
    %334 = vmatpush.bf16.msra.mxu0 0
    %335 = vmatpush.bf16.msra.mxu0 %v327
    %336 = vmatpush.bf16.msra.mxu0 %v319
    %337 = vmatmul.bf16.gmra.mxu0 %v323
    %v338 = vpop.f32.mrf.mxu0
    %v339 = vadd.f32 %v307, %v338
    %v340 = vpop.f32.mrf.mxu0
    %341 = vdwg.mxu0
    %v342 = vmul.f32 %v339, %v302
    %v343 = vpack.c.bf16 %v342, %v342
    %v344 = vld [vmem:[#allocation5] sm:$0xf]
    %v345 = vld [vmem:[#allocation5 + $0x4] sm:$0xf]
    %v346 = vld [vmem:[#allocation5 + $0x8] sm:$0xf]
    %v347 = vld [vmem:[#allocation5 + $0xc] sm:$0xf]
    %v348 = vld [vmem:[%s7] sm:$0x1]
    %v350 = vperm.slane %v348, 0
    %v356 = vunpack.c.l.b16 %v344
    %v357 = vunpack.c.l.b16 %v345
    %v358 = vunpack.c.l.b16 %v346
    %v359 = vunpack.c.l.b16 %v347
    %v360 = vpack.c.b16 %v357, %v356
    %v361 = vpack.c.b16 %v359, %v358
    %v365 = vsel %vm85, %v343, 0
    %367 = vmatpush.bf16.msra.mxu0 0
    %368 = vmatpush.bf16.msra.mxu0 0
    %369 = vmatpush.bf16.msra.mxu0 0
    %370 = vmatpush.bf16.msra.mxu0 0
    %371 = vmatpush.bf16.msra.mxu0 0
    %372 = vmatpush.bf16.msra.mxu0 0
    %373 = vmatpush.bf16.msra.mxu0 %v361
    %374 = vmatpush.bf16.msra.mxu0 %v360
    %375 = vmatmul.bf16.gmra.mxu0 %v365
    %v376 = vpop.f32.mrf.mxu0
    %v377 = vadd.f32 %v350, %v376
    %v378 = vpop.f32.mrf.mxu0
    %379 = vdwg.mxu0
    %v380 = vunpack.c.l.bf16 %v64
    %v381 = vadd.f32 %v377, %v380
    %vm382 = vcmask 254976
    %383 = vst.msk [vmem:[#allocation7] sm:$0x3] %vm382, %v381
    // Predicated region
    $region42: #{tpu_custom_call.1} parent=1 // pred_check
      _
    $region43: #{tpu_custom_call.1} parent=1 // pred_check_branch
      %385 = sbr.rel (0) target = $region45
    $region44: #{tpu_custom_call.1} parent=1 // pred_region
      %387 = vsyncadd [#allocation4], 0
      %s389 = sshll.u32 [#allocation7], 4
      %s390 = int_to_ptr.vmem [resolvable:$true] %s389
      %s391 = sshll.u32 %s8, 4
      %s392 = int_to_ptr.hbm [resolvable:$true] %s391
      %394 = dma.vmem_to_hbm [thread:$0]  %s390, 32, %s392, [#allocation4]
    $region45: #{tpu_custom_call.1} parent=1 // pred_fallthru
      _
    // Predicated region
    $region46: #{tpu_custom_call.1} parent=1 // pred_check
      _
    $region47: #{tpu_custom_call.1} parent=1 // pred_check_branch
      %396 = sbr.rel (0) target = $region49
    $region48: #{tpu_custom_call.1} parent=1 // pred_region
      %398 = vsyncadd [#allocation9], 0
      %s400 = sshll.u32 [#allocation8], 4
      %s401 = int_to_ptr.vmem [resolvable:$true] %s400
      %s402 = sshll.u32 %s9, 4
      %s403 = int_to_ptr.hbm [resolvable:$true] %s402
      %405 = dma.vmem_to_hbm [thread:$0]  %s401, 32, %s403, [#allocation9]
    $region49: #{tpu_custom_call.1} parent=1 // pred_fallthru
      _
    // Predicated region
    $region50: #{tpu_custom_call.1} parent=1 // pred_check
      _
    $region51: #{tpu_custom_call.1} parent=1 // pred_check_branch
      %407 = sbr.rel (0) target = $region53
    $region52: #{tpu_custom_call.1} parent=1 // pred_region
      %409 = dma.done [#allocation4], 32
    $region53: #{tpu_custom_call.1} parent=1 // pred_fallthru
      _
    // Predicated region
    $region54: #{tpu_custom_call.1} parent=1 // pred_check
      _
    $region55: #{tpu_custom_call.1} parent=1 // pred_check_branch
      %411 = sbr.rel (0) target = $region57
    $region56: #{tpu_custom_call.1} parent=1 // pred_region
      %413 = dma.done [#allocation9], 32
    $region57: #{tpu_custom_call.1} parent=1 // pred_fallthru
      _
    %414 = vsyncpa [#allocation3], 1
    %415 = vsyncpa [#allocation6], 1
    %416 = vsyncpa [#allocation4], 1
    %417 = vsyncpa [#allocation9], 1

</llo_original>
